<compile_context>
chip_gen: v7x
topology: tpu7x:2x2x1
jax: 0.10.0
libtpu: 0.0.40
codegen_flags: <defaults>
</compile_context>

<pallas_src>
import jax
import jax.numpy as jnp
from jax.experimental import pallas as pl
from jax.experimental.pallas import tpu as pltpu

# ---------------- problem sizes (small, deterministic) ----------------
B, Cin, H, W = 2, 4, 16, 16
Cout = 8
DILATIONS = (3, 5, 7)

HW = H * W                       # 256 pixels -> lane axis (multiple of 128)
LPAD = 128                       # flat-axis zero pad; needs >= 7*W + 7 = 119
HWP = HW + 2 * LPAD              # 512 padded flat length (lane aligned)

NTAP = 1 + 9 * len(DILATIONS)    # 28 conv taps (1x1 + three dilated 3x3)
K_RAW = NTAP * Cin               # 112
KPAD = 128                       # contraction dim padded to full lane width
BIAS_COL = K_RAW                 # constant-1 patch row carrying the folded bias


# ---------------- the kernel: fused im2col + one lane-dense MXU matmul ----------------
def cpfe_kernel(x_ref, w_ref, out_ref, p_ref):
    # x_ref  : (1, Cin, HWP)  spatially-flattened input, zero-padded LPAD each side
    # w_ref  : (Cout, KPAD)   folded effective weights (bias in column BIAS_COL)
    # out_ref: (1, Cout, HW)  lane-dense NCHW-flattened output
    # p_ref  : (KPAD, HW)     VMEM scratch: im2col patch matrix

    # Column index of every output pixel (lane axis).  The flat zero padding
    # already handles row (i) out-of-bounds; only column (j) wrap needs masking.
    col = jax.lax.broadcasted_iota(jnp.int32, (1, HW), 1) % W
    col_ok = {
        dj: jnp.broadcast_to((col + dj >= 0) & (col + dj < W), (Cin, HW))
        for d in DILATIONS for dj in (-d, d)
    }

    def tap(di, dj):
        # value at pixel p is x_flat[p + di*W + dj] (zero outside the image)
        v = x_ref[0, :, pl.ds(LPAD + di * W + dj, HW)]        # (Cin, HW)
        if dj != 0:
            v = jnp.where(col_ok[dj], v, 0.0)                 # kill row wrap
        return v

    # Tap 0: the 1x1 branch (center tap).
    p_ref[pl.ds(0, Cin), :] = tap(0, 0)

    # Taps 1..27: the three dilated 3x3 branches (same tap order as the weights).
    t = 1
    for d in DILATIONS:
        for ki in (-1, 0, 1):
            for kj in (-1, 0, 1):
                p_ref[pl.ds(t * Cin, Cin), :] = tap(ki * d, kj * d)
                t += 1

    # Rows K_RAW..KPAD-1: constant-1 bias row followed by zero padding rows.
    ridx = jax.lax.broadcasted_iota(jnp.int32, (KPAD - K_RAW, HW), 0)
    p_ref[pl.ds(K_RAW, KPAD - K_RAW), :] = (ridx == 0).astype(jnp.float32)

    # One lane-dense MXU matmul: (Cout, KPAD) @ (KPAD, HW) -> (Cout, HW).
    out_ref[0, :, :] = jnp.dot(w_ref[...], p_ref[...],
                               preferred_element_type=jnp.float32)


# ---------------- wrapper-side weight folding (tiny, once per call) ----------------
def _build_eff_weights(params):
    """Fold the fuse 1x1 conv + all biases into a single (Cout, KPAD) matrix."""
    (w1, b1), (w3, b3), (w5, b5), (w7, b7), (wf, bf) = params
    wf2 = wf[:, :, 0, 0].astype(jnp.float32)                          # (Cout, 4*Cout)
    wf_s = [wf2[:, i * Cout:(i + 1) * Cout] for i in range(4)]        # (Cout, Cout) each

    taps = [wf_s[0] @ w1[:, :, 0, 0]]                                 # 1x1 branch
    for bi, wd in enumerate((w3, w5, w7)):                            # dilated branches
        for ki in range(3):
            for kj in range(3):
                taps.append(wf_s[bi + 1] @ wd[:, :, ki, kj])          # (Cout, Cin)

    w_eff = jnp.concatenate(taps, axis=1)                             # (Cout, 112)
    b_eff = wf2 @ jnp.concatenate([b1, b3, b5, b7]) + bf              # (Cout,)
    return jnp.concatenate(
        [w_eff, b_eff[:, None],
         jnp.zeros((Cout, KPAD - K_RAW - 1), jnp.float32)], axis=1)   # (Cout, 128)


@jax.jit
def cpfe_pallas(x_nchw, params):
    """x_nchw: (B, Cin, H, W) float32 -> (B, Cout, H, W) float32 (PyTorch semantics)."""
    w_eff = _build_eff_weights(params)                                # (Cout, 128)
    x_flat = x_nchw.reshape(B, Cin, HW).astype(jnp.float32)           # free reshape
    x_pad = jnp.pad(x_flat, ((0, 0), (0, 0), (LPAD, HWP - HW - LPAD)))  # (B, Cin, 512)

    cost = pl.CostEstimate(
        flops=2 * B * Cout * KPAD * HW,
        transcendentals=0,
        bytes_accessed=(B * Cin * HWP + Cout * KPAD + B * Cout * HW) * 4,
    )

    out = pl.pallas_call(
        cpfe_kernel,
        out_shape=jax.ShapeDtypeStruct((B, Cout, HW), jnp.float32),
        grid_spec=pltpu.PrefetchScalarGridSpec(
            num_scalar_prefetch=0,
            grid=(B,),
            in_specs=[
                pl.BlockSpec((1, Cin, HWP), lambda b: (b, 0, 0)),     # raw padded input
                pl.BlockSpec((Cout, KPAD), lambda b: (0, 0)),         # folded weights
            ],
            out_specs=pl.BlockSpec((1, Cout, HW), lambda b: (b, 0, 0)),
            scratch_shapes=[pltpu.VMEM((KPAD, HW), jnp.float32)],     # patch matrix
        ),
        compiler_params=pltpu.CompilerParams(dimension_semantics=("arbitrary",)),
        cost_estimate=cost,
    )(x_pad, w_eff)

    return out.reshape(B, Cout, H, W)                                 # free reshape (NCHW)


# ---------------- pure-JAX reference (for correctness check) ----------------
def cpfe_ref(x_nchw, params):
    (w1, b1), (w3, b3), (w5, b5), (w7, b7), (wf, bf) = params

    def conv(x, w, b, dilation, padding):
        y = jax.lax.conv_general_dilated(
            x, w, window_strides=(1, 1),
            padding=((padding, padding), (padding, padding)),
            rhs_dilation=(dilation, dilation),
            dimension_numbers=("NCHW", "OIHW", "NCHW"))
        return y + b.reshape(1, -1, 1, 1)

    f1 = conv(x_nchw, w1, b1, 1, 0)
    f2 = conv(x_nchw, w3, b3, 3, 3)
    f3 = conv(x_nchw, w5, b5, 5, 5)
    f4 = conv(x_nchw, w7, b7, 7, 7)
    fused = jnp.concatenate([f1, f2, f3, f4], axis=1)
    return conv(fused, wf, bf, 1, 0)


def init_params(key):
    ks = jax.random.split(key, 10)
    def w(k, shape):
        return jax.random.normal(k, shape, jnp.float32) * 0.1
    w1 = w(ks[0], (Cout, Cin, 1, 1));  b1 = w(ks[1], (Cout,))
    w3 = w(ks[2], (Cout, Cin, 3, 3));  b3 = w(ks[3], (Cout,))
    w5 = w(ks[4], (Cout, Cin, 3, 3));  b5 = w(ks[5], (Cout,))
    w7 = w(ks[6], (Cout, Cin, 3, 3));  b7 = w(ks[7], (Cout,))
    wf = w(ks[8], (Cout, Cout * 4, 1, 1)); bf = w(ks[9], (Cout,))
    return ((w1, b1), (w3, b3), (w5, b5), (w7, b7), (wf, bf))


if __name__ == "__main__":
    key = jax.random.PRNGKey(0)
    kx, kp = jax.random.split(key)
    x = jax.random.normal(kx, (B, Cin, H, W), jnp.float32)
    params = init_params(kp)

    out = jax.block_until_ready(cpfe_pallas(x, params))
    ref = jax.block_until_ready(cpfe_ref(x, params))

    assert out.shape == (B, Cout, H, W), out.shape
    assert jnp.allclose(out, ref, atol=1e-4, rtol=1e-4), float(jnp.max(jnp.abs(out - ref)))
    print("KERNEL_OK")
</pallas_src>

<mosaic_0001>
module attributes {stable_mosaic.version = 11 : i64} {
  func.func @cpfe_kernel(%arg0: i32, %arg1: memref<1x4x512xf32, #tpu.memory_space<vmem>>, %arg2: memref<8x128xf32, #tpu.memory_space<vmem>>, %arg3: memref<1x8x256xf32, #tpu.memory_space<vmem>>, %arg4: memref<128x256xf32, #tpu.memory_space<vmem>>) attributes {dimension_semantics = [#tpu.dimension_semantics<arbitrary>], iteration_bounds = array<i64: 2>, scalar_prefetch = 0 : i64, scratch_operands = 1 : i64, tpu.core_type = #tpu.core_type<tc>, window_params = [{transform_indices = @transform_0, window_bounds = array<i64: 1, 4, 512>}, {pipeline_mode = #tpu.pipeline_mode<synchronous>, transform_indices = @transform_1, window_bounds = array<i64: 8, 128>}, {transform_indices = @transform_2, window_bounds = array<i64: 1, 8, 256>}]} {
    %0 = tpu.iota {dimensions = array<i32: 1>} : vector<1x256xi32>
    %c16_i32 = arith.constant 16 : i32
    %c0_i32 = arith.constant 0 : i32
    %1 = arith.cmpi eq, %c16_i32, %c0_i32 : i32
    %c1_i32 = arith.constant 1 : i32
    %2 = arith.select %1, %c1_i32, %c16_i32 : i32
    %3 = vector.broadcast %2 : i32 to vector<1x256xi32>
    %4 = arith.remsi %0, %3 : vector<1x256xi32>
    %c0_i32_0 = arith.constant 0 : i32
    %5 = vector.broadcast %c0_i32_0 : i32 to vector<1x256xi32>
    %6 = arith.cmpi ne, %4, %5 : vector<1x256xi32>
    %c0_i32_1 = arith.constant 0 : i32
    %7 = vector.broadcast %c0_i32_1 : i32 to vector<1x256xi32>
    %8 = arith.cmpi slt, %4, %7 : vector<1x256xi32>
    %c0_i32_2 = arith.constant 0 : i32
    %9 = arith.cmpi slt, %2, %c0_i32_2 : i32
    %10 = vector.broadcast %9 : i1 to vector<1x256xi1>
    %11 = vector.broadcast %10 : vector<1x256xi1> to vector<1x256xi1>
    %12 = arith.xori %8, %11 : vector<1x256xi1>
    %13 = arith.andi %12, %6 : vector<1x256xi1>
    %14 = vector.broadcast %2 : i32 to vector<1x256xi32>
    %15 = arith.addi %4, %14 : vector<1x256xi32>
    %16 = arith.select %13, %15, %4 : vector<1x256xi1>, vector<1x256xi32>
    %c-3_i32 = arith.constant -3 : i32
    %17 = vector.broadcast %c-3_i32 : i32 to vector<1x256xi32>
    %18 = arith.addi %16, %17 : vector<1x256xi32>
    %c0_i32_3 = arith.constant 0 : i32
    %19 = vector.broadcast %c0_i32_3 : i32 to vector<1x256xi32>
    %20 = arith.cmpi sge, %18, %19 : vector<1x256xi32>
    %c-3_i32_4 = arith.constant -3 : i32
    %21 = vector.broadcast %c-3_i32_4 : i32 to vector<1x256xi32>
    %22 = arith.addi %16, %21 : vector<1x256xi32>
    %c16_i32_5 = arith.constant 16 : i32
    %23 = vector.broadcast %c16_i32_5 : i32 to vector<1x256xi32>
    %24 = arith.cmpi slt, %22, %23 : vector<1x256xi32>
    %25 = arith.andi %20, %24 : vector<1x256xi1>
    %26 = vector.shape_cast %25 : vector<1x256xi1> to vector<1x256xi1>
    %27 = vector.broadcast %26 : vector<1x256xi1> to vector<4x256xi1>
    %c3_i32 = arith.constant 3 : i32
    %28 = vector.broadcast %c3_i32 : i32 to vector<1x256xi32>
    %29 = arith.addi %16, %28 : vector<1x256xi32>
    %c0_i32_6 = arith.constant 0 : i32
    %30 = vector.broadcast %c0_i32_6 : i32 to vector<1x256xi32>
    %31 = arith.cmpi sge, %29, %30 : vector<1x256xi32>
    %c3_i32_7 = arith.constant 3 : i32
    %32 = vector.broadcast %c3_i32_7 : i32 to vector<1x256xi32>
    %33 = arith.addi %16, %32 : vector<1x256xi32>
    %c16_i32_8 = arith.constant 16 : i32
    %34 = vector.broadcast %c16_i32_8 : i32 to vector<1x256xi32>
    %35 = arith.cmpi slt, %33, %34 : vector<1x256xi32>
    %36 = arith.andi %31, %35 : vector<1x256xi1>
    %37 = vector.shape_cast %36 : vector<1x256xi1> to vector<1x256xi1>
    %38 = vector.broadcast %37 : vector<1x256xi1> to vector<4x256xi1>
    %c-5_i32 = arith.constant -5 : i32
    %39 = vector.broadcast %c-5_i32 : i32 to vector<1x256xi32>
    %40 = arith.addi %16, %39 : vector<1x256xi32>
    %c0_i32_9 = arith.constant 0 : i32
    %41 = vector.broadcast %c0_i32_9 : i32 to vector<1x256xi32>
    %42 = arith.cmpi sge, %40, %41 : vector<1x256xi32>
    %c-5_i32_10 = arith.constant -5 : i32
    %43 = vector.broadcast %c-5_i32_10 : i32 to vector<1x256xi32>
    %44 = arith.addi %16, %43 : vector<1x256xi32>
    %c16_i32_11 = arith.constant 16 : i32
    %45 = vector.broadcast %c16_i32_11 : i32 to vector<1x256xi32>
    %46 = arith.cmpi slt, %44, %45 : vector<1x256xi32>
    %47 = arith.andi %42, %46 : vector<1x256xi1>
    %48 = vector.shape_cast %47 : vector<1x256xi1> to vector<1x256xi1>
    %49 = vector.broadcast %48 : vector<1x256xi1> to vector<4x256xi1>
    %c5_i32 = arith.constant 5 : i32
    %50 = vector.broadcast %c5_i32 : i32 to vector<1x256xi32>
    %51 = arith.addi %16, %50 : vector<1x256xi32>
    %c0_i32_12 = arith.constant 0 : i32
    %52 = vector.broadcast %c0_i32_12 : i32 to vector<1x256xi32>
    %53 = arith.cmpi sge, %51, %52 : vector<1x256xi32>
    %c5_i32_13 = arith.constant 5 : i32
    %54 = vector.broadcast %c5_i32_13 : i32 to vector<1x256xi32>
    %55 = arith.addi %16, %54 : vector<1x256xi32>
    %c16_i32_14 = arith.constant 16 : i32
    %56 = vector.broadcast %c16_i32_14 : i32 to vector<1x256xi32>
    %57 = arith.cmpi slt, %55, %56 : vector<1x256xi32>
    %58 = arith.andi %53, %57 : vector<1x256xi1>
    %59 = vector.shape_cast %58 : vector<1x256xi1> to vector<1x256xi1>
    %60 = vector.broadcast %59 : vector<1x256xi1> to vector<4x256xi1>
    %c-7_i32 = arith.constant -7 : i32
    %61 = vector.broadcast %c-7_i32 : i32 to vector<1x256xi32>
    %62 = arith.addi %16, %61 : vector<1x256xi32>
    %c0_i32_15 = arith.constant 0 : i32
    %63 = vector.broadcast %c0_i32_15 : i32 to vector<1x256xi32>
    %64 = arith.cmpi sge, %62, %63 : vector<1x256xi32>
    %c-7_i32_16 = arith.constant -7 : i32
    %65 = vector.broadcast %c-7_i32_16 : i32 to vector<1x256xi32>
    %66 = arith.addi %16, %65 : vector<1x256xi32>
    %c16_i32_17 = arith.constant 16 : i32
    %67 = vector.broadcast %c16_i32_17 : i32 to vector<1x256xi32>
    %68 = arith.cmpi slt, %66, %67 : vector<1x256xi32>
    %69 = arith.andi %64, %68 : vector<1x256xi1>
    %70 = vector.shape_cast %69 : vector<1x256xi1> to vector<1x256xi1>
    %71 = vector.broadcast %70 : vector<1x256xi1> to vector<4x256xi1>
    %c7_i32 = arith.constant 7 : i32
    %72 = vector.broadcast %c7_i32 : i32 to vector<1x256xi32>
    %73 = arith.addi %16, %72 : vector<1x256xi32>
    %c0_i32_18 = arith.constant 0 : i32
    %74 = vector.broadcast %c0_i32_18 : i32 to vector<1x256xi32>
    %75 = arith.cmpi sge, %73, %74 : vector<1x256xi32>
    %c7_i32_19 = arith.constant 7 : i32
    %76 = vector.broadcast %c7_i32_19 : i32 to vector<1x256xi32>
    %77 = arith.addi %16, %76 : vector<1x256xi32>
    %c16_i32_20 = arith.constant 16 : i32
    %78 = vector.broadcast %c16_i32_20 : i32 to vector<1x256xi32>
    %79 = arith.cmpi slt, %77, %78 : vector<1x256xi32>
    %80 = arith.andi %75, %79 : vector<1x256xi1>
    %81 = vector.shape_cast %80 : vector<1x256xi1> to vector<1x256xi1>
    %82 = vector.broadcast %81 : vector<1x256xi1> to vector<4x256xi1>
    %c0 = arith.constant 0 : index
    %c0_21 = arith.constant 0 : index
    %c128 = arith.constant 128 : index
    %83 = vector.load %arg1[%c0, %c0_21, %c128] : memref<1x4x512xf32, #tpu.memory_space<vmem>>, vector<1x4x256xf32>
    %84 = vector.shape_cast %83 : vector<1x4x256xf32> to vector<4x256xf32>
    %c0_22 = arith.constant 0 : index
    %c0_23 = arith.constant 0 : index
    %85 = vector.load %arg4[%c0_22, %c0_23] : memref<128x256xf32, #tpu.memory_space<vmem>>, vector<4x256xf32>
    tpu.vector_store %arg4[%c0_22, %c0_23], %84 {strides = array<i32>} : memref<128x256xf32, #tpu.memory_space<vmem>>, vector<4x256xf32>,
    %c0_24 = arith.constant 0 : index
    %c0_25 = arith.constant 0 : index
    %c77 = arith.constant 77 : index
    %86 = vector.load %arg1[%c0_24, %c0_25, %c77] : memref<1x4x512xf32, #tpu.memory_space<vmem>>, vector<1x4x256xf32>
    %87 = vector.shape_cast %86 : vector<1x4x256xf32> to vector<4x256xf32>
    %cst = arith.constant 0.000000e+00 : f32
    %88 = vector.broadcast %cst : f32 to vector<4x256xf32>
    %89 = arith.select %27, %87, %88 : vector<4x256xi1>, vector<4x256xf32>
    %c4 = arith.constant 4 : index
    %c0_26 = arith.constant 0 : index
    %90 = vector.load %arg4[%c4, %c0_26] : memref<128x256xf32, #tpu.memory_space<vmem>>, vector<4x256xf32>
    tpu.vector_store %arg4[%c4, %c0_26], %89 {strides = array<i32>} : memref<128x256xf32, #tpu.memory_space<vmem>>, vector<4x256xf32>,
    %c0_27 = arith.constant 0 : index
    %c0_28 = arith.constant 0 : index
    %c80 = arith.constant 80 : index
    %91 = vector.load %arg1[%c0_27, %c0_28, %c80] : memref<1x4x512xf32, #tpu.memory_space<vmem>>, vector<1x4x256xf32>
    %92 = vector.shape_cast %91 : vector<1x4x256xf32> to vector<4x256xf32>
    %c8 = arith.constant 8 : index
    %c0_29 = arith.constant 0 : index
    %93 = vector.load %arg4[%c8, %c0_29] : memref<128x256xf32, #tpu.memory_space<vmem>>, vector<4x256xf32>
    tpu.vector_store %arg4[%c8, %c0_29], %92 {strides = array<i32>} : memref<128x256xf32, #tpu.memory_space<vmem>>, vector<4x256xf32>,
    %c0_30 = arith.constant 0 : index
    %c0_31 = arith.constant 0 : index
    %c83 = arith.constant 83 : index
    %94 = vector.load %arg1[%c0_30, %c0_31, %c83] : memref<1x4x512xf32, #tpu.memory_space<vmem>>, vector<1x4x256xf32>
    %95 = vector.shape_cast %94 : vector<1x4x256xf32> to vector<4x256xf32>
    %cst_32 = arith.constant 0.000000e+00 : f32
    %96 = vector.broadcast %cst_32 : f32 to vector<4x256xf32>
    %97 = arith.select %38, %95, %96 : vector<4x256xi1>, vector<4x256xf32>
    %c12 = arith.constant 12 : index
    %c0_33 = arith.constant 0 : index
    %98 = vector.load %arg4[%c12, %c0_33] : memref<128x256xf32, #tpu.memory_space<vmem>>, vector<4x256xf32>
    tpu.vector_store %arg4[%c12, %c0_33], %97 {strides = array<i32>} : memref<128x256xf32, #tpu.memory_space<vmem>>, vector<4x256xf32>,
    %c0_34 = arith.constant 0 : index
    %c0_35 = arith.constant 0 : index
    %c125 = arith.constant 125 : index
    %99 = vector.load %arg1[%c0_34, %c0_35, %c125] : memref<1x4x512xf32, #tpu.memory_space<vmem>>, vector<1x4x256xf32>
    %100 = vector.shape_cast %99 : vector<1x4x256xf32> to vector<4x256xf32>
    %cst_36 = arith.constant 0.000000e+00 : f32
    %101 = vector.broadcast %cst_36 : f32 to vector<4x256xf32>
    %102 = arith.select %27, %100, %101 : vector<4x256xi1>, vector<4x256xf32>
    %c16 = arith.constant 16 : index
    %c0_37 = arith.constant 0 : index
    %103 = vector.load %arg4[%c16, %c0_37] : memref<128x256xf32, #tpu.memory_space<vmem>>, vector<4x256xf32>
    tpu.vector_store %arg4[%c16, %c0_37], %102 {strides = array<i32>} : memref<128x256xf32, #tpu.memory_space<vmem>>, vector<4x256xf32>,
    %c0_38 = arith.constant 0 : index
    %c0_39 = arith.constant 0 : index
    %c128_40 = arith.constant 128 : index
    %104 = vector.load %arg1[%c0_38, %c0_39, %c128_40] : memref<1x4x512xf32, #tpu.memory_space<vmem>>, vector<1x4x256xf32>
    %105 = vector.shape_cast %104 : vector<1x4x256xf32> to vector<4x256xf32>
    %c20 = arith.constant 20 : index
    %c0_41 = arith.constant 0 : index
    %106 = vector.load %arg4[%c20, %c0_41] : memref<128x256xf32, #tpu.memory_space<vmem>>, vector<4x256xf32>
    tpu.vector_store %arg4[%c20, %c0_41], %105 {strides = array<i32>} : memref<128x256xf32, #tpu.memory_space<vmem>>, vector<4x256xf32>,
    %c0_42 = arith.constant 0 : index
    %c0_43 = arith.constant 0 : index
    %c131 = arith.constant 131 : index
    %107 = vector.load %arg1[%c0_42, %c0_43, %c131] : memref<1x4x512xf32, #tpu.memory_space<vmem>>, vector<1x4x256xf32>
    %108 = vector.shape_cast %107 : vector<1x4x256xf32> to vector<4x256xf32>
    %cst_44 = arith.constant 0.000000e+00 : f32
    %109 = vector.broadcast %cst_44 : f32 to vector<4x256xf32>
    %110 = arith.select %38, %108, %109 : vector<4x256xi1>, vector<4x256xf32>
    %c24 = arith.constant 24 : index
    %c0_45 = arith.constant 0 : index
    %111 = vector.load %arg4[%c24, %c0_45] : memref<128x256xf32, #tpu.memory_space<vmem>>, vector<4x256xf32>
    tpu.vector_store %arg4[%c24, %c0_45], %110 {strides = array<i32>} : memref<128x256xf32, #tpu.memory_space<vmem>>, vector<4x256xf32>,
    %c0_46 = arith.constant 0 : index
    %c0_47 = arith.constant 0 : index
    %c173 = arith.constant 173 : index
    %112 = vector.load %arg1[%c0_46, %c0_47, %c173] : memref<1x4x512xf32, #tpu.memory_space<vmem>>, vector<1x4x256xf32>
    %113 = vector.shape_cast %112 : vector<1x4x256xf32> to vector<4x256xf32>
    %cst_48 = arith.constant 0.000000e+00 : f32
    %114 = vector.broadcast %cst_48 : f32 to vector<4x256xf32>
    %115 = arith.select %27, %113, %114 : vector<4x256xi1>, vector<4x256xf32>
    %c28 = arith.constant 28 : index
    %c0_49 = arith.constant 0 : index
    %116 = vector.load %arg4[%c28, %c0_49] : memref<128x256xf32, #tpu.memory_space<vmem>>, vector<4x256xf32>
    tpu.vector_store %arg4[%c28, %c0_49], %115 {strides = array<i32>} : memref<128x256xf32, #tpu.memory_space<vmem>>, vector<4x256xf32>,
    %c0_50 = arith.constant 0 : index
    %c0_51 = arith.constant 0 : index
    %c176 = arith.constant 176 : index
    %117 = vector.load %arg1[%c0_50, %c0_51, %c176] : memref<1x4x512xf32, #tpu.memory_space<vmem>>, vector<1x4x256xf32>
    %118 = vector.shape_cast %117 : vector<1x4x256xf32> to vector<4x256xf32>
    %c32 = arith.constant 32 : index
    %c0_52 = arith.constant 0 : index
    %119 = vector.load %arg4[%c32, %c0_52] : memref<128x256xf32, #tpu.memory_space<vmem>>, vector<4x256xf32>
    tpu.vector_store %arg4[%c32, %c0_52], %118 {strides = array<i32>} : memref<128x256xf32, #tpu.memory_space<vmem>>, vector<4x256xf32>,
    %c0_53 = arith.constant 0 : index
    %c0_54 = arith.constant 0 : index
    %c179 = arith.constant 179 : index
    %120 = vector.load %arg1[%c0_53, %c0_54, %c179] : memref<1x4x512xf32, #tpu.memory_space<vmem>>, vector<1x4x256xf32>
    %121 = vector.shape_cast %120 : vector<1x4x256xf32> to vector<4x256xf32>
    %cst_55 = arith.constant 0.000000e+00 : f32
    %122 = vector.broadcast %cst_55 : f32 to vector<4x256xf32>
    %123 = arith.select %38, %121, %122 : vector<4x256xi1>, vector<4x256xf32>
    %c36 = arith.constant 36 : index
    %c0_56 = arith.constant 0 : index
    %124 = vector.load %arg4[%c36, %c0_56] : memref<128x256xf32, #tpu.memory_space<vmem>>, vector<4x256xf32>
    tpu.vector_store %arg4[%c36, %c0_56], %123 {strides = array<i32>} : memref<128x256xf32, #tpu.memory_space<vmem>>, vector<4x256xf32>,
    %c0_57 = arith.constant 0 : index
    %c0_58 = arith.constant 0 : index
    %c43 = arith.constant 43 : index
    %125 = vector.load %arg1[%c0_57, %c0_58, %c43] : memref<1x4x512xf32, #tpu.memory_space<vmem>>, vector<1x4x256xf32>
    %126 = vector.shape_cast %125 : vector<1x4x256xf32> to vector<4x256xf32>
    %cst_59 = arith.constant 0.000000e+00 : f32
    %127 = vector.broadcast %cst_59 : f32 to vector<4x256xf32>
    %128 = arith.select %49, %126, %127 : vector<4x256xi1>, vector<4x256xf32>
    %c40 = arith.constant 40 : index
    %c0_60 = arith.constant 0 : index
    %129 = vector.load %arg4[%c40, %c0_60] : memref<128x256xf32, #tpu.memory_space<vmem>>, vector<4x256xf32>
    tpu.vector_store %arg4[%c40, %c0_60], %128 {strides = array<i32>} : memref<128x256xf32, #tpu.memory_space<vmem>>, vector<4x256xf32>,
    %c0_61 = arith.constant 0 : index
    %c0_62 = arith.constant 0 : index
    %c48 = arith.constant 48 : index
    %130 = vector.load %arg1[%c0_61, %c0_62, %c48] : memref<1x4x512xf32, #tpu.memory_space<vmem>>, vector<1x4x256xf32>
    %131 = vector.shape_cast %130 : vector<1x4x256xf32> to vector<4x256xf32>
    %c44 = arith.constant 44 : index
    %c0_63 = arith.constant 0 : index
    %132 = vector.load %arg4[%c44, %c0_63] : memref<128x256xf32, #tpu.memory_space<vmem>>, vector<4x256xf32>
    tpu.vector_store %arg4[%c44, %c0_63], %131 {strides = array<i32>} : memref<128x256xf32, #tpu.memory_space<vmem>>, vector<4x256xf32>,
    %c0_64 = arith.constant 0 : index
    %c0_65 = arith.constant 0 : index
    %c53 = arith.constant 53 : index
    %133 = vector.load %arg1[%c0_64, %c0_65, %c53] : memref<1x4x512xf32, #tpu.memory_space<vmem>>, vector<1x4x256xf32>
    %134 = vector.shape_cast %133 : vector<1x4x256xf32> to vector<4x256xf32>
    %cst_66 = arith.constant 0.000000e+00 : f32
    %135 = vector.broadcast %cst_66 : f32 to vector<4x256xf32>
    %136 = arith.select %60, %134, %135 : vector<4x256xi1>, vector<4x256xf32>
    %c48_67 = arith.constant 48 : index
    %c0_68 = arith.constant 0 : index
    %137 = vector.load %arg4[%c48_67, %c0_68] : memref<128x256xf32, #tpu.memory_space<vmem>>, vector<4x256xf32>
    tpu.vector_store %arg4[%c48_67, %c0_68], %136 {strides = array<i32>} : memref<128x256xf32, #tpu.memory_space<vmem>>, vector<4x256xf32>,
    %c0_69 = arith.constant 0 : index
    %c0_70 = arith.constant 0 : index
    %c123 = arith.constant 123 : index
    %138 = vector.load %arg1[%c0_69, %c0_70, %c123] : memref<1x4x512xf32, #tpu.memory_space<vmem>>, vector<1x4x256xf32>
    %139 = vector.shape_cast %138 : vector<1x4x256xf32> to vector<4x256xf32>
    %cst_71 = arith.constant 0.000000e+00 : f32
    %140 = vector.broadcast %cst_71 : f32 to vector<4x256xf32>
    %141 = arith.select %49, %139, %140 : vector<4x256xi1>, vector<4x256xf32>
    %c52 = arith.constant 52 : index
    %c0_72 = arith.constant 0 : index
    %142 = vector.load %arg4[%c52, %c0_72] : memref<128x256xf32, #tpu.memory_space<vmem>>, vector<4x256xf32>
    tpu.vector_store %arg4[%c52, %c0_72], %141 {strides = array<i32>} : memref<128x256xf32, #tpu.memory_space<vmem>>, vector<4x256xf32>,
    %c0_73 = arith.constant 0 : index
    %c0_74 = arith.constant 0 : index
    %c128_75 = arith.constant 128 : index
    %143 = vector.load %arg1[%c0_73, %c0_74, %c128_75] : memref<1x4x512xf32, #tpu.memory_space<vmem>>, vector<1x4x256xf32>
    %144 = vector.shape_cast %143 : vector<1x4x256xf32> to vector<4x256xf32>
    %c56 = arith.constant 56 : index
    %c0_76 = arith.constant 0 : index
    %145 = vector.load %arg4[%c56, %c0_76] : memref<128x256xf32, #tpu.memory_space<vmem>>, vector<4x256xf32>
    tpu.vector_store %arg4[%c56, %c0_76], %144 {strides = array<i32>} : memref<128x256xf32, #tpu.memory_space<vmem>>, vector<4x256xf32>,
    %c0_77 = arith.constant 0 : index
    %c0_78 = arith.constant 0 : index
    %c133 = arith.constant 133 : index
    %146 = vector.load %arg1[%c0_77, %c0_78, %c133] : memref<1x4x512xf32, #tpu.memory_space<vmem>>, vector<1x4x256xf32>
    %147 = vector.shape_cast %146 : vector<1x4x256xf32> to vector<4x256xf32>
    %cst_79 = arith.constant 0.000000e+00 : f32
    %148 = vector.broadcast %cst_79 : f32 to vector<4x256xf32>
    %149 = arith.select %60, %147, %148 : vector<4x256xi1>, vector<4x256xf32>
    %c60 = arith.constant 60 : index
    %c0_80 = arith.constant 0 : index
    %150 = vector.load %arg4[%c60, %c0_80] : memref<128x256xf32, #tpu.memory_space<vmem>>, vector<4x256xf32>
    tpu.vector_store %arg4[%c60, %c0_80], %149 {strides = array<i32>} : memref<128x256xf32, #tpu.memory_space<vmem>>, vector<4x256xf32>,
    %c0_81 = arith.constant 0 : index
    %c0_82 = arith.constant 0 : index
    %c203 = arith.constant 203 : index
    %151 = vector.load %arg1[%c0_81, %c0_82, %c203] : memref<1x4x512xf32, #tpu.memory_space<vmem>>, vector<1x4x256xf32>
    %152 = vector.shape_cast %151 : vector<1x4x256xf32> to vector<4x256xf32>
    %cst_83 = arith.constant 0.000000e+00 : f32
    %153 = vector.broadcast %cst_83 : f32 to vector<4x256xf32>
    %154 = arith.select %49, %152, %153 : vector<4x256xi1>, vector<4x256xf32>
    %c64 = arith.constant 64 : index
    %c0_84 = arith.constant 0 : index
    %155 = vector.load %arg4[%c64, %c0_84] : memref<128x256xf32, #tpu.memory_space<vmem>>, vector<4x256xf32>
    tpu.vector_store %arg4[%c64, %c0_84], %154 {strides = array<i32>} : memref<128x256xf32, #tpu.memory_space<vmem>>, vector<4x256xf32>,
    %c0_85 = arith.constant 0 : index
    %c0_86 = arith.constant 0 : index
    %c208 = arith.constant 208 : index
    %156 = vector.load %arg1[%c0_85, %c0_86, %c208] : memref<1x4x512xf32, #tpu.memory_space<vmem>>, vector<1x4x256xf32>
    %157 = vector.shape_cast %156 : vector<1x4x256xf32> to vector<4x256xf32>
    %c68 = arith.constant 68 : index
    %c0_87 = arith.constant 0 : index
    %158 = vector.load %arg4[%c68, %c0_87] : memref<128x256xf32, #tpu.memory_space<vmem>>, vector<4x256xf32>
    tpu.vector_store %arg4[%c68, %c0_87], %157 {strides = array<i32>} : memref<128x256xf32, #tpu.memory_space<vmem>>, vector<4x256xf32>,
    %c0_88 = arith.constant 0 : index
    %c0_89 = arith.constant 0 : index
    %c213 = arith.constant 213 : index
    %159 = vector.load %arg1[%c0_88, %c0_89, %c213] : memref<1x4x512xf32, #tpu.memory_space<vmem>>, vector<1x4x256xf32>
    %160 = vector.shape_cast %159 : vector<1x4x256xf32> to vector<4x256xf32>
    %cst_90 = arith.constant 0.000000e+00 : f32
    %161 = vector.broadcast %cst_90 : f32 to vector<4x256xf32>
    %162 = arith.select %60, %160, %161 : vector<4x256xi1>, vector<4x256xf32>
    %c72 = arith.constant 72 : index
    %c0_91 = arith.constant 0 : index
    %163 = vector.load %arg4[%c72, %c0_91] : memref<128x256xf32, #tpu.memory_space<vmem>>, vector<4x256xf32>
    tpu.vector_store %arg4[%c72, %c0_91], %162 {strides = array<i32>} : memref<128x256xf32, #tpu.memory_space<vmem>>, vector<4x256xf32>,
    %c0_92 = arith.constant 0 : index
    %c0_93 = arith.constant 0 : index
    %c9 = arith.constant 9 : index
    %164 = vector.load %arg1[%c0_92, %c0_93, %c9] : memref<1x4x512xf32, #tpu.memory_space<vmem>>, vector<1x4x256xf32>
    %165 = vector.shape_cast %164 : vector<1x4x256xf32> to vector<4x256xf32>
    %cst_94 = arith.constant 0.000000e+00 : f32
    %166 = vector.broadcast %cst_94 : f32 to vector<4x256xf32>
    %167 = arith.select %71, %165, %166 : vector<4x256xi1>, vector<4x256xf32>
    %c76 = arith.constant 76 : index
    %c0_95 = arith.constant 0 : index
    %168 = vector.load %arg4[%c76, %c0_95] : memref<128x256xf32, #tpu.memory_space<vmem>>, vector<4x256xf32>
    tpu.vector_store %arg4[%c76, %c0_95], %167 {strides = array<i32>} : memref<128x256xf32, #tpu.memory_space<vmem>>, vector<4x256xf32>,
    %c0_96 = arith.constant 0 : index
    %c0_97 = arith.constant 0 : index
    %c16_98 = arith.constant 16 : index
    %169 = vector.load %arg1[%c0_96, %c0_97, %c16_98] : memref<1x4x512xf32, #tpu.memory_space<vmem>>, vector<1x4x256xf32>
    %170 = vector.shape_cast %169 : vector<1x4x256xf32> to vector<4x256xf32>
    %c80_99 = arith.constant 80 : index
    %c0_100 = arith.constant 0 : index
    %171 = vector.load %arg4[%c80_99, %c0_100] : memref<128x256xf32, #tpu.memory_space<vmem>>, vector<4x256xf32>
    tpu.vector_store %arg4[%c80_99, %c0_100], %170 {strides = array<i32>} : memref<128x256xf32, #tpu.memory_space<vmem>>, vector<4x256xf32>,
    %c0_101 = arith.constant 0 : index
    %c0_102 = arith.constant 0 : index
    %c23 = arith.constant 23 : index
    %172 = vector.load %arg1[%c0_101, %c0_102, %c23] : memref<1x4x512xf32, #tpu.memory_space<vmem>>, vector<1x4x256xf32>
    %173 = vector.shape_cast %172 : vector<1x4x256xf32> to vector<4x256xf32>
    %cst_103 = arith.constant 0.000000e+00 : f32
    %174 = vector.broadcast %cst_103 : f32 to vector<4x256xf32>
    %175 = arith.select %82, %173, %174 : vector<4x256xi1>, vector<4x256xf32>
    %c84 = arith.constant 84 : index
    %c0_104 = arith.constant 0 : index
    %176 = vector.load %arg4[%c84, %c0_104] : memref<128x256xf32, #tpu.memory_space<vmem>>, vector<4x256xf32>
    tpu.vector_store %arg4[%c84, %c0_104], %175 {strides = array<i32>} : memref<128x256xf32, #tpu.memory_space<vmem>>, vector<4x256xf32>,
    %c0_105 = arith.constant 0 : index
    %c0_106 = arith.constant 0 : index
    %c121 = arith.constant 121 : index
    %177 = vector.load %arg1[%c0_105, %c0_106, %c121] : memref<1x4x512xf32, #tpu.memory_space<vmem>>, vector<1x4x256xf32>
    %178 = vector.shape_cast %177 : vector<1x4x256xf32> to vector<4x256xf32>
    %cst_107 = arith.constant 0.000000e+00 : f32
    %179 = vector.broadcast %cst_107 : f32 to vector<4x256xf32>
    %180 = arith.select %71, %178, %179 : vector<4x256xi1>, vector<4x256xf32>
    %c88 = arith.constant 88 : index
    %c0_108 = arith.constant 0 : index
    %181 = vector.load %arg4[%c88, %c0_108] : memref<128x256xf32, #tpu.memory_space<vmem>>, vector<4x256xf32>
    tpu.vector_store %arg4[%c88, %c0_108], %180 {strides = array<i32>} : memref<128x256xf32, #tpu.memory_space<vmem>>, vector<4x256xf32>,
    %c0_109 = arith.constant 0 : index
    %c0_110 = arith.constant 0 : index
    %c128_111 = arith.constant 128 : index
    %182 = vector.load %arg1[%c0_109, %c0_110, %c128_111] : memref<1x4x512xf32, #tpu.memory_space<vmem>>, vector<1x4x256xf32>
    %183 = vector.shape_cast %182 : vector<1x4x256xf32> to vector<4x256xf32>
    %c92 = arith.constant 92 : index
    %c0_112 = arith.constant 0 : index
    %184 = vector.load %arg4[%c92, %c0_112] : memref<128x256xf32, #tpu.memory_space<vmem>>, vector<4x256xf32>
    tpu.vector_store %arg4[%c92, %c0_112], %183 {strides = array<i32>} : memref<128x256xf32, #tpu.memory_space<vmem>>, vector<4x256xf32>,
    %c0_113 = arith.constant 0 : index
    %c0_114 = arith.constant 0 : index
    %c135 = arith.constant 135 : index
    %185 = vector.load %arg1[%c0_113, %c0_114, %c135] : memref<1x4x512xf32, #tpu.memory_space<vmem>>, vector<1x4x256xf32>
    %186 = vector.shape_cast %185 : vector<1x4x256xf32> to vector<4x256xf32>
    %cst_115 = arith.constant 0.000000e+00 : f32
    %187 = vector.broadcast %cst_115 : f32 to vector<4x256xf32>
    %188 = arith.select %82, %186, %187 : vector<4x256xi1>, vector<4x256xf32>
    %c96 = arith.constant 96 : index
    %c0_116 = arith.constant 0 : index
    %189 = vector.load %arg4[%c96, %c0_116] : memref<128x256xf32, #tpu.memory_space<vmem>>, vector<4x256xf32>
    tpu.vector_store %arg4[%c96, %c0_116], %188 {strides = array<i32>} : memref<128x256xf32, #tpu.memory_space<vmem>>, vector<4x256xf32>,
    %c0_117 = arith.constant 0 : index
    %c0_118 = arith.constant 0 : index
    %c233 = arith.constant 233 : index
    %190 = vector.load %arg1[%c0_117, %c0_118, %c233] : memref<1x4x512xf32, #tpu.memory_space<vmem>>, vector<1x4x256xf32>
    %191 = vector.shape_cast %190 : vector<1x4x256xf32> to vector<4x256xf32>
    %cst_119 = arith.constant 0.000000e+00 : f32
    %192 = vector.broadcast %cst_119 : f32 to vector<4x256xf32>
    %193 = arith.select %71, %191, %192 : vector<4x256xi1>, vector<4x256xf32>
    %c100 = arith.constant 100 : index
    %c0_120 = arith.constant 0 : index
    %194 = vector.load %arg4[%c100, %c0_120] : memref<128x256xf32, #tpu.memory_space<vmem>>, vector<4x256xf32>
    tpu.vector_store %arg4[%c100, %c0_120], %193 {strides = array<i32>} : memref<128x256xf32, #tpu.memory_space<vmem>>, vector<4x256xf32>,
    %c0_121 = arith.constant 0 : index
    %c0_122 = arith.constant 0 : index
    %c240 = arith.constant 240 : index
    %195 = vector.load %arg1[%c0_121, %c0_122, %c240] : memref<1x4x512xf32, #tpu.memory_space<vmem>>, vector<1x4x256xf32>
    %196 = vector.shape_cast %195 : vector<1x4x256xf32> to vector<4x256xf32>
    %c104 = arith.constant 104 : index
    %c0_123 = arith.constant 0 : index
    %197 = vector.load %arg4[%c104, %c0_123] : memref<128x256xf32, #tpu.memory_space<vmem>>, vector<4x256xf32>
    tpu.vector_store %arg4[%c104, %c0_123], %196 {strides = array<i32>} : memref<128x256xf32, #tpu.memory_space<vmem>>, vector<4x256xf32>,
    %c0_124 = arith.constant 0 : index
    %c0_125 = arith.constant 0 : index
    %c247 = arith.constant 247 : index
    %198 = vector.load %arg1[%c0_124, %c0_125, %c247] : memref<1x4x512xf32, #tpu.memory_space<vmem>>, vector<1x4x256xf32>
    %199 = vector.shape_cast %198 : vector<1x4x256xf32> to vector<4x256xf32>
    %cst_126 = arith.constant 0.000000e+00 : f32
    %200 = vector.broadcast %cst_126 : f32 to vector<4x256xf32>
    %201 = arith.select %82, %199, %200 : vector<4x256xi1>, vector<4x256xf32>
    %c108 = arith.constant 108 : index
    %c0_127 = arith.constant 0 : index
    %202 = vector.load %arg4[%c108, %c0_127] : memref<128x256xf32, #tpu.memory_space<vmem>>, vector<4x256xf32>
    tpu.vector_store %arg4[%c108, %c0_127], %201 {strides = array<i32>} : memref<128x256xf32, #tpu.memory_space<vmem>>, vector<4x256xf32>,
    %203 = tpu.iota {dimensions = array<i32: 0>} : vector<16x256xi32>
    %c0_i32_128 = arith.constant 0 : i32
    %204 = vector.broadcast %c0_i32_128 : i32 to vector<16x256xi32>
    %205 = arith.cmpi eq, %203, %204 : vector<16x256xi32>
    %206 = arith.extui %205 : vector<16x256xi1> to vector<16x256xi32>
    %207 = arith.sitofp %206 : vector<16x256xi32> to vector<16x256xf32>
    %c112 = arith.constant 112 : index
    %c0_129 = arith.constant 0 : index
    %208 = vector.load %arg4[%c112, %c0_129] : memref<128x256xf32, #tpu.memory_space<vmem>>, vector<16x256xf32>
    tpu.vector_store %arg4[%c112, %c0_129], %207 {strides = array<i32>} : memref<128x256xf32, #tpu.memory_space<vmem>>, vector<16x256xf32>,
    %c0_130 = arith.constant 0 : index
    %c0_131 = arith.constant 0 : index
    %209 = vector.load %arg2[%c0_130, %c0_131] : memref<8x128xf32, #tpu.memory_space<vmem>>, vector<8x128xf32>
    %c0_132 = arith.constant 0 : index
    %c0_133 = arith.constant 0 : index
    %210 = vector.load %arg4[%c0_132, %c0_133] : memref<128x256xf32, #tpu.memory_space<vmem>>, vector<128x256xf32>
    %cst_134 = arith.constant dense<0.000000e+00> : vector<8x256xf32>
    %211 = tpu.matmul %209, %210, %cst_134 {dimension_numbers = #tpu.dot_dimension_numbers<[1], [0], [0], [1], [0, 0, 1, 1], [], []>} : vector<8x128xf32>, vector<128x256xf32>, vector<8x256xf32> -> vector<8x256xf32>
    %c0_135 = arith.constant 0 : index
    %c0_136 = arith.constant 0 : index
    %c0_137 = arith.constant 0 : index
    %212 = vector.load %arg3[%c0_135, %c0_136, %c0_137] : memref<1x8x256xf32, #tpu.memory_space<vmem>>, vector<1x8x256xf32>
    %213 = vector.shape_cast %212 : vector<1x8x256xf32> to vector<8x256xf32>
    %214 = vector.shape_cast %211 : vector<8x256xf32> to vector<1x8x256xf32>
    tpu.vector_store %arg3[%c0_135, %c0_136, %c0_137], %214 {strides = array<i32>} : memref<1x8x256xf32, #tpu.memory_space<vmem>>, vector<1x8x256xf32>,
    return
  }
  func.func @transform_0(%arg0: i32) -> (i32, i32, i32) {
    %c0_i32 = arith.constant 0 : i32
    %c0_i32_0 = arith.constant 0 : i32
    %c0_i32_1 = arith.constant 0 : i32
    return %arg0, %c0_i32, %c0_i32_0 : i32, i32, i32
  }
  func.func @transform_1(%arg0: i32) -> (i32, i32) {
    %c0_i32 = arith.constant 0 : i32
    %c0_i32_0 = arith.constant 0 : i32
    %c0_i32_1 = arith.constant 0 : i32
    return %c0_i32, %c0_i32_0 : i32, i32
  }
  func.func @transform_2(%arg0: i32) -> (i32, i32, i32) {
    %c0_i32 = arith.constant 0 : i32
    %c0_i32_0 = arith.constant 0 : i32
    %c0_i32_1 = arith.constant 0 : i32
    return %arg0, %c0_i32, %c0_i32_0 : i32, i32, i32
  }
}

</mosaic_0001>

<llo_original>
// kernel: cpfe_pallas.1
$region0: #{cpfe_pallas.1}
  #allocation0 [shape = 'u32[]', space=smem, size = 0x4, offset = 0x4, fixed_abs, tag = 'smem constant byte address 0x4 - core index']
  #allocation1 [shape = 'u32[144,128]{1,0:T(1,128)}', space=vmem, size = 0x12000, scoped, tag = 'internal scratch']
  #allocation2 [shape = 'f32[128,256]{1,0:T(8,128)}', space=vmem, size = 0x20000, scoped, tag = 'scratch operand']
  %s0 = inlined_call_operand.vmem [shape: f32[2,4,512], index: 0, kind: input, shape index: {}]
  %s1 = inlined_call_operand.vmem [shape: f32[8,128], index: 1, kind: input, shape index: {}]
  %s2 = inlined_call_operand.vmem [shape: f32[2,8,256], index: 2, kind: output, shape index: {}]
  %s3 = sld [smem:[#allocation0]]
  $region41: #{cpfe_pallas.1} parent=0
    _
  %s5 = ssub.s32 1, %s3
  %s6 = scalar_select 0, %s5, %s3
  loop: start=0, step=1, limit=4
  $region2: #{cpfe_pallas.1} parent=0 // loop_pre_header
    _
  $region3: #{cpfe_pallas.1} parent=0 // loop_header
    %s8 = sphi 0, %s12
    %p9 = scmp.ge.s32.totalorder %s8, 4
    %s18 = sphi 0, %s20
    %s21 = sphi 0, %s18
    %s22 = sphi 0, %s21
    %s38 = sphi 0, %s22
    %s42 = sphi 0, %s42
    %s44 = sphi 0, %s42
    %s45 = sphi 0, %s44
    %s59 = sphi 0, %s45
    %s65 = sphi 0, %s67
    %s68 = sphi 0, %s65
    %s69 = sphi 0, %s68
    %s85 = sphi 0, %s69
  $region4: #{cpfe_pallas.1} parent=0 // loop_header_branch
    %11 = sbr.rel (%p9) target = $region8
  $region5: #{cpfe_pallas.1} parent=0 // loop_body
    %s13 = ssub.s32 %s8, 1
    %s14 = ssub.s32 %s8, 2
    %s15 = sadd.s32 %s8, 1
    %s16 = ssub.s32 %s8, %s15
    %p17 = scmp.eq.s32.totalorder %s16, 0
    %s19 = sadd.s32 %s18, 1
    %s20 = scalar_select %p17, %s18, %s19
    %p23 = pneg %p17
    %p24 = scmp.eq.s32.totalorder %s8, 1
    %p25 = por %p23, %p24
    %p26 = scmp.ne.s32.totalorder %s18, %s21
    %p27 = scmp.eq.s32.totalorder %s8, 0
    %p28 = por %p26, %p27
    %p29 = scmp.ne.s32.totalorder %s18, %s21
    %p30 = scmp.eq.s32.totalorder %s13, 1
    %p31 = por %p29, %p30
    %p32 = scmp.ne.s32.totalorder %s21, %s22
    %p33 = scmp.eq.s32.totalorder %s13, 0
    %p34 = por %p32, %p33
    %p35 = scmp.ne.s32.totalorder %s21, %s22
    %p36 = scmp.eq.s32.totalorder %s14, 1
    %p37 = por %p35, %p36
    %p39 = scmp.ne.s32.totalorder %s22, %s38
    %p40 = scmp.eq.s32.totalorder %s14, 0
    %p41 = por %p39, %p40
    %s43 = sadd.s32 %s42, 1
    %p46 = scmp.eq.s32.totalorder %s8, 1
    %p47 = scmp.ne.s32.totalorder %s42, %s44
    %p48 = scmp.eq.s32.totalorder %s8, 0
    %p49 = por %p47, %p48
    %p50 = scmp.ne.s32.totalorder %s42, %s44
    %p51 = scmp.eq.s32.totalorder %s13, 1
    %p52 = por %p50, %p51
    %p53 = scmp.ne.s32.totalorder %s44, %s45
    %p54 = scmp.eq.s32.totalorder %s13, 0
    %p55 = por %p53, %p54
    %p56 = scmp.ne.s32.totalorder %s44, %s45
    %p57 = scmp.eq.s32.totalorder %s14, 1
    %p58 = por %p56, %p57
    %p60 = scmp.ne.s32.totalorder %s45, %s59
    %p61 = scmp.eq.s32.totalorder %s14, 0
    %p62 = por %p60, %p61
    %s63 = ssub.s32 %s8, %s15
    %p64 = scmp.eq.s32.totalorder %s63, 0
    %s66 = sadd.s32 %s65, 1
    %s67 = scalar_select %p64, %s65, %s66
    %p70 = pneg %p64
    %p71 = scmp.eq.s32.totalorder %s8, 1
    %p72 = por %p70, %p71
    %p73 = scmp.ne.s32.totalorder %s65, %s68
    %p74 = scmp.eq.s32.totalorder %s8, 0
    %p75 = por %p73, %p74
    %p76 = scmp.ne.s32.totalorder %s65, %s68
    %p77 = scmp.eq.s32.totalorder %s13, 1
    %p78 = por %p76, %p77
    %p79 = scmp.ne.s32.totalorder %s68, %s69
    %p80 = scmp.eq.s32.totalorder %s13, 0
    %p81 = por %p79, %p80
    %p82 = scmp.ne.s32.totalorder %s68, %s69
    %p83 = scmp.eq.s32.totalorder %s14, 1
    %p84 = por %p82, %p83
    %p86 = scmp.ne.s32.totalorder %s69, %s85
    %p87 = scmp.eq.s32.totalorder %s14, 0
    %p88 = por %p86, %p87
    %p89 = scmp.le.s32.totalorder 1, %s8
    %p90 = scmp.lt.s32.totalorder %s8, 3
    %p91 = pnand %p89, %p90
    %p92 = pneg %p91
    // Predicated region
    $region9: #{cpfe_pallas.1} parent=5 // pred_check
      _
    $region10: #{cpfe_pallas.1} parent=5 // pred_check_branch
      %94 = sbr.rel (%p91) target = $region12
    $region11: #{cpfe_pallas.1} parent=5 // pred_region
      %s95 = ssub.s32 %s8, 1
      // Predicated region
      $region13: #{cpfe_pallas.1} parent=11 // pred_check
        %p96 = pneg %p55
      $region14: #{cpfe_pallas.1} parent=11 // pred_check_branch
        %98 = sbr.rel (%p96) target = $region16
      $region15: #{cpfe_pallas.1} parent=11 // pred_region
        _
      $region16: #{cpfe_pallas.1} parent=11 // pred_fallthru
        _
    $region12: #{cpfe_pallas.1} parent=5 // pred_fallthru
      _
    %p99 = scmp.lt.s32.totalorder %s8, 2
    // Predicated region
    $region17: #{cpfe_pallas.1} parent=5 // pred_check
      %p100 = pneg %p99
    $region18: #{cpfe_pallas.1} parent=5 // pred_check_branch
      %102 = sbr.rel (%p100) target = $region20
    $region19: #{cpfe_pallas.1} parent=5 // pred_region
      // Predicated region
      $region21: #{cpfe_pallas.1} parent=19 // pred_check
        %p103 = pneg %p28
      $region22: #{cpfe_pallas.1} parent=19 // pred_check_branch
        %105 = sbr.rel (%p103) target = $region24
      $region23: #{cpfe_pallas.1} parent=19 // pred_region
        %p106 = scmp.lt.s32.totalorder %s8, 1
        %s107 = scalar_select %p106, %s8, 1
        %s108 = smul.addr %s107, 4
        %s109 = smul.addr %s108, 4
        %s110 = scalar_lea.vmem %s0, %s109
      $region24: #{cpfe_pallas.1} parent=19 // pred_fallthru
        _
    $region20: #{cpfe_pallas.1} parent=5 // pred_fallthru
      _
    %p111 = scmp.le.s32.totalorder 1, %s8
    %p112 = scmp.lt.s32.totalorder %s8, 3
    %p113 = pnand %p111, %p112
    %p114 = pneg %p113
    // Predicated region
    $region25: #{cpfe_pallas.1} parent=5 // pred_check
      _
    $region26: #{cpfe_pallas.1} parent=5 // pred_check_branch
      %116 = sbr.rel (%p113) target = $region28
    $region27: #{cpfe_pallas.1} parent=5 // pred_region
      %s117 = ssub.s32 %s8, 1
      %p118 = scmp.lt.s32.totalorder %s13, 1
      %s119 = scalar_select %p118, %s13, 1
      %s120 = smul.addr %s119, 4
      %s121 = smul.addr %s120, 4
      %s122 = scalar_lea.vmem %s0, %s121
      %p123 = pneg %p34
      %p124 = pneg %p31
      %p125 = pneg %p55
      %p126 = pneg %p52
      %p127 = pneg %p81
      %p128 = pneg %p78
      %p129 = scmp.lt.s32.totalorder %s13, 1
      %s130 = scalar_select %p129, %s13, 1
      %s131 = smul.addr %s130, 2
      %s132 = smul.addr %s131, 8
      %s133 = scalar_lea.vmem %s2, %s132
      %p134 = scmp.lt.s32.totalorder %s13, 1
      %s135 = scalar_select %p134, %s13, 1
      %s136 = smul.addr %s135, 4
      %s137 = smul.addr %s136, 4
      %s138 = scalar_lea.vmem %s0, %s137
      %p139 = scmp.lt.s32.totalorder %s13, 1
      %s140 = scalar_select %p139, %s13, 1
      %s141 = smul.addr %s140, 2
      %s142 = smul.addr %s141, 8
      %s143 = scalar_lea.vmem %s2, %s142
      %v144 = vlaneseq
      %v145 = vand.u32 %v144, 127
      %v146 = vadd.s32 %v145, 128
      %vm147 = vcmp.lt.s32.totalorder %v145, 0
      %v148 = vsub.s32 0, %v145
      %v149 = vsel %vm147, %v148, %v145
      %v150 = vshrl.u32 %v149, 4
      %v151 = vand.u32 %v149, 15
      %v152 = vsub.s32 0, %v151
      %v153 = vsel %vm147, %v152, %v151
      %vm154 = vcmp.lt.s32.totalorder %v146, 0
      %v155 = vsub.s32 0, %v146
      %v156 = vsel %vm154, %v155, %v146
      %v157 = vshrl.u32 %v156, 4
      %v158 = vand.u32 %v156, 15
      %v159 = vsub.s32 0, %v158
      %v160 = vsel %vm154, %v159, %v158
      %vm161 = vcmp.ne.s32.totalorder %v153, 0
      %vm162 = vcmp.ne.s32.totalorder %v160, 0
      %vm163 = vcmp.lt.s32.totalorder %v153, 0
      %vm164 = vcmp.lt.s32.totalorder %v160, 0
      %vm165 = vmand %vm163, %vm161
      %vm166 = vmand %vm164, %vm162
      %v167 = vadd.s32 %v153, 16
      %v168 = vadd.s32 %v160, 16
      %v169 = vsel %vm165, %v167, %v153
      %v170 = vsel %vm166, %v168, %v160
      %v171 = vadd.s32 %v169, 4294967293
      %v172 = vadd.s32 %v170, 4294967293
      %vm173 = vcmp.ge.s32.totalorder %v171, 0
      %vm174 = vcmp.ge.s32.totalorder %v172, 0
      %vm175 = vcmp.lt.s32.totalorder %v171, 16
      %vm176 = vcmp.lt.s32.totalorder %v172, 16
      %vm177 = vmand %vm173, %vm175
      %vm178 = vmand %vm174, %vm176
      %v179 = vsel %vm177, 1, 0
      %v180 = vsel %vm178, 1, 0
      %vm181 = vcmp.eq.s32.totalorder %v179, 1
      %vm182 = vcmp.eq.s32.totalorder %v180, 1
      %v183 = vadd.s32 %v169, 3
      %v184 = vadd.s32 %v170, 3
      %vm185 = vcmp.ge.s32.totalorder %v183, 0
      %vm186 = vcmp.ge.s32.totalorder %v184, 0
      %vm187 = vcmp.lt.s32.totalorder %v183, 16
      %vm188 = vcmp.lt.s32.totalorder %v184, 16
      %vm189 = vmand %vm185, %vm187
      %vm190 = vmand %vm186, %vm188
      %v191 = vsel %vm189, 1, 0
      %v192 = vsel %vm190, 1, 0
      %vm193 = vcmp.eq.s32.totalorder %v191, 1
      %vm194 = vcmp.eq.s32.totalorder %v192, 1
      %v195 = vadd.s32 %v169, 4294967291
      %v196 = vadd.s32 %v170, 4294967291
      %vm197 = vcmp.ge.s32.totalorder %v195, 0
      %vm198 = vcmp.ge.s32.totalorder %v196, 0
      %vm199 = vcmp.lt.s32.totalorder %v195, 16
      %vm200 = vcmp.lt.s32.totalorder %v196, 16
      %vm201 = vmand %vm197, %vm199
      %vm202 = vmand %vm198, %vm200
      %v203 = vsel %vm201, 1, 0
      %v204 = vsel %vm202, 1, 0
      %vm205 = vcmp.eq.s32.totalorder %v203, 1
      %vm206 = vcmp.eq.s32.totalorder %v204, 1
      %v207 = vadd.s32 %v169, 5
      %v208 = vadd.s32 %v170, 5
      %vm209 = vcmp.ge.s32.totalorder %v207, 0
      %vm210 = vcmp.ge.s32.totalorder %v208, 0
      %vm211 = vcmp.lt.s32.totalorder %v207, 16
      %vm212 = vcmp.lt.s32.totalorder %v208, 16
      %vm213 = vmand %vm209, %vm211
      %vm214 = vmand %vm210, %vm212
      %v215 = vsel %vm213, 1, 0
      %v216 = vsel %vm214, 1, 0
      %vm217 = vcmp.eq.s32.totalorder %v215, 1
      %vm218 = vcmp.eq.s32.totalorder %v216, 1
      %v219 = vadd.s32 %v169, 4294967289
      %v220 = vadd.s32 %v170, 4294967289
      %vm221 = vcmp.ge.s32.totalorder %v219, 0
      %vm222 = vcmp.ge.s32.totalorder %v220, 0
      %vm223 = vcmp.lt.s32.totalorder %v219, 16
      %vm224 = vcmp.lt.s32.totalorder %v220, 16
      %vm225 = vmand %vm221, %vm223
      %vm226 = vmand %vm222, %vm224
      %v227 = vsel %vm225, 1, 0
      %v228 = vsel %vm226, 1, 0
      %vm229 = vcmp.eq.s32.totalorder %v227, 1
      %vm230 = vcmp.eq.s32.totalorder %v228, 1
      %v231 = vadd.s32 %v169, 7
      %v232 = vadd.s32 %v170, 7
      %vm233 = vcmp.ge.s32.totalorder %v231, 0
      %vm234 = vcmp.ge.s32.totalorder %v232, 0
      %vm235 = vcmp.lt.s32.totalorder %v231, 16
      %vm236 = vcmp.lt.s32.totalorder %v232, 16
      %vm237 = vmand %vm233, %vm235
      %vm238 = vmand %vm234, %vm236
      %v239 = vsel %vm237, 1, 0
      %v240 = vsel %vm238, 1, 0
      %vm241 = vcmp.eq.s32.totalorder %v239, 1
      %vm242 = vcmp.eq.s32.totalorder %v240, 1
      %v243 = vld [vmem:[%s138 + $0x4] sm:$0xff]
      %v245 = vcombine.high %v243, %v243
      %247 = vst [vmem:[#allocation2] sm:$0xf] %v243
      %248 = vst [vmem:[#allocation2 + $0x8] sm:$0xf] %v245
      %v249 = vld [vmem:[%s138] sm:$0xff]
      %v250 = vld [vmem:[%s138 + $0x8] sm:$0xf]
      %v253 = vcombine.high %v249, %v249
      %254 = vrot.lane.b32.xlu0 %v249, 51
      %v255 = vpop.permute.xlu0 %254
      %256 = vrot.lane.b32.xlu0 %v253, 51
      %v257 = vpop.permute.xlu0 %256
      %258 = vrot.lane.b32.xlu0 %v250, 51
      %v259 = vpop.permute.xlu0 %258
      %vm260 = vcmask 416768
      %v261 = vsel %vm260, %v255, %v257
      %v262 = vsel %vm260, %v257, %v259
      %v265 = vsel %vm181, %v261, 0.0
      %v266 = vsel %vm182, %v262, 0.0
      %v269 = vrot.slane %v265, 4
      %v270 = vrot.slane %v266, 4
      %273 = vst [vmem:[#allocation2] sm:$0xf0] %v269
      %274 = vst [vmem:[#allocation2 + $0x8] sm:$0xf0] %v270
      %v275 = vld [vmem:[%s138] sm:$0xff]
      %v276 = vld [vmem:[%s138 + $0x8] sm:$0xf]
      %v279 = vcombine.high %v275, %v275
      %280 = vrot.lane.b32.xlu0 %v275, 48
      %v281 = vpop.permute.xlu0 %280
      %282 = vrot.lane.b32.xlu0 %v279, 48
      %v283 = vpop.permute.xlu0 %282
      %284 = vrot.lane.b32.xlu0 %v276, 48
      %v285 = vpop.permute.xlu0 %284
      %vm286 = vcmask 392192
      %v287 = vsel %vm286, %v281, %v283
      %v288 = vsel %vm286, %v283, %v285
      %291 = vst [vmem:[#allocation2 + $0x10] sm:$0xf] %v287
      %292 = vst [vmem:[#allocation2 + $0x18] sm:$0xf] %v288
      %v293 = vld [vmem:[%s138] sm:$0xff]
      %v294 = vld [vmem:[%s138 + $0x8] sm:$0xf]
      %v297 = vcombine.high %v293, %v293
      %298 = vrot.lane.b32.xlu0 %v293, 45
      %v299 = vpop.permute.xlu0 %298
      %300 = vrot.lane.b32.xlu0 %v297, 45
      %v301 = vpop.permute.xlu0 %300
      %302 = vrot.lane.b32.xlu0 %v294, 45
      %v303 = vpop.permute.xlu0 %302
      %vm304 = vcmask 367616
      %v305 = vsel %vm304, %v299, %v301
      %v306 = vsel %vm304, %v301, %v303
      %v309 = vsel %vm193, %v305, 0.0
      %v310 = vsel %vm194, %v306, 0.0
      %v313 = vrot.slane %v309, 4
      %v314 = vrot.slane %v310, 4
      %317 = vst [vmem:[#allocation2 + $0x10] sm:$0xf0] %v313
      %318 = vst [vmem:[#allocation2 + $0x18] sm:$0xf0] %v314
      %v319 = vld [vmem:[%s138] sm:$0xff]
      %v320 = vld [vmem:[%s138 + $0x8] sm:$0xf]
      %v323 = vcombine.high %v319, %v319
      %324 = vrot.lane.b32.xlu0 %v319, 3
      %v325 = vpop.permute.xlu0 %324
      %326 = vrot.lane.b32.xlu0 %v323, 3
      %v327 = vpop.permute.xlu0 %326
      %328 = vrot.lane.b32.xlu0 %v320, 3
      %v329 = vpop.permute.xlu0 %328
      %vm330 = vcmask 23552
      %v331 = vsel %vm330, %v325, %v327
      %v332 = vsel %vm330, %v327, %v329
      %v335 = vsel %vm181, %v331, 0.0
      %v336 = vsel %vm182, %v332, 0.0
      %337 = vst [vmem:[#allocation2 + $0x20] sm:$0xf] %v335
      %338 = vst [vmem:[#allocation2 + $0x28] sm:$0xf] %v336
      %v339 = vld [vmem:[%s138 + $0x4] sm:$0xff]
      %v341 = vcombine.low %v339, %v339
      %343 = vst [vmem:[#allocation2 + $0x20] sm:$0xf0] %v341
      %344 = vst [vmem:[#allocation2 + $0x28] sm:$0xf0] %v339
      %v345 = vld [vmem:[%s138 + $0x4] sm:$0xff]
      %v346 = vld [vmem:[%s138 + $0xc] sm:$0xf]
      %v349 = vcombine.high %v345, %v345
      %350 = vrot.lane.b32.xlu0 %v345, 125
      %v351 = vpop.permute.xlu0 %350
      %352 = vrot.lane.b32.xlu0 %v349, 125
      %v353 = vpop.permute.xlu0 %352
      %354 = vrot.lane.b32.xlu0 %v346, 125
      %v355 = vpop.permute.xlu0 %354
      %vm356 = vcmask 1022976
      %v357 = vsel %vm356, %v351, %v353
      %v358 = vsel %vm356, %v353, %v355
      %v361 = vsel %vm193, %v357, 0.0
      %v362 = vsel %vm194, %v358, 0.0
      %363 = vst [vmem:[#allocation2 + $0x30] sm:$0xf] %v361
      %364 = vst [vmem:[#allocation2 + $0x38] sm:$0xf] %v362
      %v365 = vld [vmem:[%s138 + $0x4] sm:$0xff]
      %v366 = vld [vmem:[%s138 + $0xc] sm:$0xf]
      %v369 = vcombine.high %v365, %v365
      %370 = vrot.lane.b32.xlu0 %v365, 83
      %v371 = vpop.permute.xlu0 %370
      %372 = vrot.lane.b32.xlu0 %v369, 83
      %v373 = vpop.permute.xlu0 %372
      %374 = vrot.lane.b32.xlu0 %v366, 83
      %v375 = vpop.permute.xlu0 %374
      %vm376 = vcmask 678912
      %v377 = vsel %vm376, %v371, %v373
      %v378 = vsel %vm376, %v373, %v375
      %v381 = vsel %vm181, %v377, 0.0
      %v382 = vsel %vm182, %v378, 0.0
      %v385 = vrot.slane %v381, 4
      %v386 = vrot.slane %v382, 4
      %389 = vst [vmem:[#allocation2 + $0x30] sm:$0xf0] %v385
      %390 = vst [vmem:[#allocation2 + $0x38] sm:$0xf0] %v386
      %v391 = vld [vmem:[%s138 + $0x4] sm:$0xff]
      %v392 = vld [vmem:[%s138 + $0xc] sm:$0xf]
      %v395 = vcombine.high %v391, %v391
      %396 = vrot.lane.b32.xlu0 %v391, 80
      %v397 = vpop.permute.xlu0 %396
      %398 = vrot.lane.b32.xlu0 %v395, 80
      %v399 = vpop.permute.xlu0 %398
      %400 = vrot.lane.b32.xlu0 %v392, 80
      %v401 = vpop.permute.xlu0 %400
      %vm402 = vcmask 654336
      %v403 = vsel %vm402, %v397, %v399
      %v404 = vsel %vm402, %v399, %v401
      %407 = vst [vmem:[#allocation2 + $0x40] sm:$0xf] %v403
      %408 = vst [vmem:[#allocation2 + $0x48] sm:$0xf] %v404
      %v409 = vld [vmem:[%s138 + $0x4] sm:$0xff]
      %v410 = vld [vmem:[%s138 + $0xc] sm:$0xf]
      %v413 = vcombine.high %v409, %v409
      %414 = vrot.lane.b32.xlu0 %v409, 77
      %v415 = vpop.permute.xlu0 %414
      %416 = vrot.lane.b32.xlu0 %v413, 77
      %v417 = vpop.permute.xlu0 %416
      %418 = vrot.lane.b32.xlu0 %v410, 77
      %v419 = vpop.permute.xlu0 %418
      %vm420 = vcmask 629760
      %v421 = vsel %vm420, %v415, %v417
      %v422 = vsel %vm420, %v417, %v419
      %v425 = vsel %vm193, %v421, 0.0
      %v426 = vsel %vm194, %v422, 0.0
      %v429 = vrot.slane %v425, 4
      %v430 = vrot.slane %v426, 4
      %433 = vst [vmem:[#allocation2 + $0x40] sm:$0xf0] %v429
      %434 = vst [vmem:[#allocation2 + $0x48] sm:$0xf0] %v430
      %v435 = vld [vmem:[%s138] sm:$0xff]
      %v436 = vld [vmem:[%s138 + $0x8] sm:$0xf]
      %v439 = vcombine.high %v435, %v435
      %440 = vrot.lane.b32.xlu0 %v435, 85
      %v441 = vpop.permute.xlu0 %440
      %442 = vrot.lane.b32.xlu0 %v439, 85
      %v443 = vpop.permute.xlu0 %442
      %444 = vrot.lane.b32.xlu0 %v436, 85
      %v445 = vpop.permute.xlu0 %444
      %vm446 = vcmask 695296
      %v447 = vsel %vm446, %v441, %v443
      %v448 = vsel %vm446, %v443, %v445
      %v451 = vsel %vm205, %v447, 0.0
      %v452 = vsel %vm206, %v448, 0.0
      %453 = vst [vmem:[#allocation2 + $0x50] sm:$0xf] %v451
      %454 = vst [vmem:[#allocation2 + $0x58] sm:$0xf] %v452
      %v455 = vld [vmem:[%s138] sm:$0xff]
      %v456 = vld [vmem:[%s138 + $0x8] sm:$0xf]
      %v459 = vcombine.low %v455, %v455
      %v460 = vcombine.low %v456, %v456
      %461 = vrot.lane.b32.xlu0 %v459, 80
      %v462 = vpop.permute.xlu0 %461
      %463 = vrot.lane.b32.xlu0 %v455, 80
      %v464 = vpop.permute.xlu0 %463
      %465 = vrot.lane.b32.xlu0 %v460, 80
      %v466 = vpop.permute.xlu0 %465
      %v467 = vsel %vm402, %v462, %v464
      %v468 = vsel %vm402, %v464, %v466
      %471 = vst [vmem:[#allocation2 + $0x50] sm:$0xf0] %v467
      %472 = vst [vmem:[#allocation2 + $0x58] sm:$0xf0] %v468
      %v473 = vld [vmem:[%s138] sm:$0xff]
      %v474 = vld [vmem:[%s138 + $0x8] sm:$0xf]
      %v477 = vcombine.high %v473, %v473
      %478 = vrot.lane.b32.xlu0 %v473, 75
      %v479 = vpop.permute.xlu0 %478
      %480 = vrot.lane.b32.xlu0 %v477, 75
      %v481 = vpop.permute.xlu0 %480
      %482 = vrot.lane.b32.xlu0 %v474, 75
      %v483 = vpop.permute.xlu0 %482
      %vm484 = vcmask 613376
      %v485 = vsel %vm484, %v479, %v481
      %v486 = vsel %vm484, %v481, %v483
      %v489 = vsel %vm217, %v485, 0.0
      %v490 = vsel %vm218, %v486, 0.0
      %491 = vst [vmem:[#allocation2 + $0x60] sm:$0xf] %v489
      %492 = vst [vmem:[#allocation2 + $0x68] sm:$0xf] %v490
      %v493 = vld [vmem:[%s138] sm:$0xff]
      %v494 = vld [vmem:[%s138 + $0x8] sm:$0xf]
      %v497 = vcombine.high %v493, %v493
      %498 = vrot.lane.b32.xlu0 %v493, 5
      %v499 = vpop.permute.xlu0 %498
      %500 = vrot.lane.b32.xlu0 %v497, 5
      %v501 = vpop.permute.xlu0 %500
      %502 = vrot.lane.b32.xlu0 %v494, 5
      %v503 = vpop.permute.xlu0 %502
      %vm504 = vcmask 39936
      %v505 = vsel %vm504, %v499, %v501
      %v506 = vsel %vm504, %v501, %v503
      %v509 = vsel %vm205, %v505, 0.0
      %v510 = vsel %vm206, %v506, 0.0
      %v513 = vrot.slane %v509, 4
      %v514 = vrot.slane %v510, 4
      %517 = vst [vmem:[#allocation2 + $0x60] sm:$0xf0] %v513
      %518 = vst [vmem:[#allocation2 + $0x68] sm:$0xf0] %v514
      %v519 = vld [vmem:[%s138 + $0x4] sm:$0xff]
      %v521 = vcombine.high %v519, %v519
      %523 = vst [vmem:[#allocation2 + $0x70] sm:$0xf] %v519
      %524 = vst [vmem:[#allocation2 + $0x78] sm:$0xf] %v521
      %v525 = vld [vmem:[%s138 + $0x4] sm:$0xff]
      %v526 = vld [vmem:[%s138 + $0xc] sm:$0xf]
      %v529 = vcombine.high %v525, %v525
      %530 = vrot.lane.b32.xlu0 %v525, 123
      %v531 = vpop.permute.xlu0 %530
      %532 = vrot.lane.b32.xlu0 %v529, 123
      %v533 = vpop.permute.xlu0 %532
      %534 = vrot.lane.b32.xlu0 %v526, 123
      %v535 = vpop.permute.xlu0 %534
      %vm536 = vcmask 1006592
      %v537 = vsel %vm536, %v531, %v533
      %v538 = vsel %vm536, %v533, %v535
      %v541 = vsel %vm217, %v537, 0.0
      %v542 = vsel %vm218, %v538, 0.0
      %v545 = vrot.slane %v541, 4
      %v546 = vrot.slane %v542, 4
      %549 = vst [vmem:[#allocation2 + $0x70] sm:$0xf0] %v545
      %550 = vst [vmem:[#allocation2 + $0x78] sm:$0xf0] %v546
      %v551 = vld [vmem:[%s138 + $0x4] sm:$0xff]
      %v552 = vld [vmem:[%s138 + $0xc] sm:$0xf]
      %v555 = vcombine.high %v551, %v551
      %556 = vrot.lane.b32.xlu0 %v551, 53
      %v557 = vpop.permute.xlu0 %556
      %558 = vrot.lane.b32.xlu0 %v555, 53
      %v559 = vpop.permute.xlu0 %558
      %560 = vrot.lane.b32.xlu0 %v552, 53
      %v561 = vpop.permute.xlu0 %560
      %vm562 = vcmask 433152
      %v563 = vsel %vm562, %v557, %v559
      %v564 = vsel %vm562, %v559, %v561
      %v567 = vsel %vm205, %v563, 0.0
      %v568 = vsel %vm206, %v564, 0.0
      %569 = vst [vmem:[#allocation2 + $0x80] sm:$0xf] %v567
      %570 = vst [vmem:[#allocation2 + $0x88] sm:$0xf] %v568
      %v571 = vld [vmem:[%s138 + $0x4] sm:$0xff]
      %v572 = vld [vmem:[%s138 + $0xc] sm:$0xf]
      %v575 = vcombine.low %v571, %v571
      %v576 = vcombine.low %v572, %v572
      %577 = vrot.lane.b32.xlu0 %v575, 48
      %v578 = vpop.permute.xlu0 %577
      %579 = vrot.lane.b32.xlu0 %v571, 48
      %v580 = vpop.permute.xlu0 %579
      %581 = vrot.lane.b32.xlu0 %v576, 48
      %v582 = vpop.permute.xlu0 %581
      %v583 = vsel %vm286, %v578, %v580
      %v584 = vsel %vm286, %v580, %v582
      %587 = vst [vmem:[#allocation2 + $0x80] sm:$0xf0] %v583
      %588 = vst [vmem:[#allocation2 + $0x88] sm:$0xf0] %v584
      %v589 = vld [vmem:[%s138 + $0x4] sm:$0xff]
      %v590 = vld [vmem:[%s138 + $0xc] sm:$0xf]
      %v593 = vcombine.high %v589, %v589
      %594 = vrot.lane.b32.xlu0 %v589, 43
      %v595 = vpop.permute.xlu0 %594
      %596 = vrot.lane.b32.xlu0 %v593, 43
      %v597 = vpop.permute.xlu0 %596
      %598 = vrot.lane.b32.xlu0 %v590, 43
      %v599 = vpop.permute.xlu0 %598
      %vm600 = vcmask 351232
      %v601 = vsel %vm600, %v595, %v597
      %v602 = vsel %vm600, %v597, %v599
      %v605 = vsel %vm217, %v601, 0.0
      %v606 = vsel %vm218, %v602, 0.0
      %607 = vst [vmem:[#allocation2 + $0x90] sm:$0xf] %v605
      %608 = vst [vmem:[#allocation2 + $0x98] sm:$0xf] %v606
      %v609 = vld [vmem:[%s138] sm:$0xff]
      %v610 = vld [vmem:[%s138 + $0x8] sm:$0xf]
      %v613 = vcombine.high %v609, %v609
      %614 = vrot.lane.b32.xlu0 %v609, 119
      %v615 = vpop.permute.xlu0 %614
      %616 = vrot.lane.b32.xlu0 %v613, 119
      %v617 = vpop.permute.xlu0 %616
      %618 = vrot.lane.b32.xlu0 %v610, 119
      %v619 = vpop.permute.xlu0 %618
      %vm620 = vcmask 973824
      %v621 = vsel %vm620, %v615, %v617
      %v622 = vsel %vm620, %v617, %v619
      %v625 = vsel %vm229, %v621, 0.0
      %v626 = vsel %vm230, %v622, 0.0
      %v629 = vrot.slane %v625, 4
      %v630 = vrot.slane %v626, 4
      %633 = vst [vmem:[#allocation2 + $0x90] sm:$0xf0] %v629
      %634 = vst [vmem:[#allocation2 + $0x98] sm:$0xf0] %v630
      %v635 = vld [vmem:[%s138] sm:$0xff]
      %v636 = vld [vmem:[%s138 + $0x8] sm:$0xf]
      %v639 = vcombine.high %v635, %v635
      %640 = vrot.lane.b32.xlu0 %v635, 112
      %v641 = vpop.permute.xlu0 %640
      %642 = vrot.lane.b32.xlu0 %v639, 112
      %v643 = vpop.permute.xlu0 %642
      %644 = vrot.lane.b32.xlu0 %v636, 112
      %v645 = vpop.permute.xlu0 %644
      %vm646 = vcmask 916480
      %v647 = vsel %vm646, %v641, %v643
      %v648 = vsel %vm646, %v643, %v645
      %651 = vst [vmem:[#allocation2 + $0xa0] sm:$0xf] %v647
      %652 = vst [vmem:[#allocation2 + $0xa8] sm:$0xf] %v648
      %v653 = vld [vmem:[%s138] sm:$0xff]
      %v654 = vld [vmem:[%s138 + $0x8] sm:$0xf]
      %v657 = vcombine.high %v653, %v653
      %658 = vrot.lane.b32.xlu0 %v653, 105
      %v659 = vpop.permute.xlu0 %658
      %660 = vrot.lane.b32.xlu0 %v657, 105
      %v661 = vpop.permute.xlu0 %660
      %662 = vrot.lane.b32.xlu0 %v654, 105
      %v663 = vpop.permute.xlu0 %662
      %vm664 = vcmask 859136
      %v665 = vsel %vm664, %v659, %v661
      %v666 = vsel %vm664, %v661, %v663
      %v669 = vsel %vm241, %v665, 0.0
      %v670 = vsel %vm242, %v666, 0.0
      %v673 = vrot.slane %v669, 4
      %v674 = vrot.slane %v670, 4
      %677 = vst [vmem:[#allocation2 + $0xa0] sm:$0xf0] %v673
      %678 = vst [vmem:[#allocation2 + $0xa8] sm:$0xf0] %v674
      %v679 = vld [vmem:[%s138] sm:$0xff]
      %v680 = vld [vmem:[%s138 + $0x8] sm:$0xf]
      %v683 = vcombine.high %v679, %v679
      %684 = vrot.lane.b32.xlu0 %v679, 7
      %v685 = vpop.permute.xlu0 %684
      %686 = vrot.lane.b32.xlu0 %v683, 7
      %v687 = vpop.permute.xlu0 %686
      %688 = vrot.lane.b32.xlu0 %v680, 7
      %v689 = vpop.permute.xlu0 %688
      %vm690 = vcmask 56320
      %v691 = vsel %vm690, %v685, %v687
      %v692 = vsel %vm690, %v687, %v689
      %v695 = vsel %vm229, %v691, 0.0
      %v696 = vsel %vm230, %v692, 0.0
      %697 = vst [vmem:[#allocation2 + $0xb0] sm:$0xf] %v695
      %698 = vst [vmem:[#allocation2 + $0xb8] sm:$0xf] %v696
      %v699 = vld [vmem:[%s138 + $0x4] sm:$0xff]
      %v701 = vcombine.low %v699, %v699
      %703 = vst [vmem:[#allocation2 + $0xb0] sm:$0xf0] %v701
      %704 = vst [vmem:[#allocation2 + $0xb8] sm:$0xf0] %v699
      %v705 = vld [vmem:[%s138 + $0x4] sm:$0xff]
      %v706 = vld [vmem:[%s138 + $0xc] sm:$0xf]
      %v709 = vcombine.high %v705, %v705
      %710 = vrot.lane.b32.xlu0 %v705, 121
      %v711 = vpop.permute.xlu0 %710
      %712 = vrot.lane.b32.xlu0 %v709, 121
      %v713 = vpop.permute.xlu0 %712
      %714 = vrot.lane.b32.xlu0 %v706, 121
      %v715 = vpop.permute.xlu0 %714
      %vm716 = vcmask 990208
      %v717 = vsel %vm716, %v711, %v713
      %v718 = vsel %vm716, %v713, %v715
      %v721 = vsel %vm241, %v717, 0.0
      %v722 = vsel %vm242, %v718, 0.0
      %723 = vst [vmem:[#allocation2 + $0xc0] sm:$0xf] %v721
      %724 = vst [vmem:[#allocation2 + $0xc8] sm:$0xf] %v722
      %v725 = vld [vmem:[%s138 + $0x4] sm:$0xff]
      %v726 = vld [vmem:[%s138 + $0xc] sm:$0xf]
      %v729 = vcombine.high %v725, %v725
      %730 = vrot.lane.b32.xlu0 %v725, 23
      %v731 = vpop.permute.xlu0 %730
      %732 = vrot.lane.b32.xlu0 %v729, 23
      %v733 = vpop.permute.xlu0 %732
      %734 = vrot.lane.b32.xlu0 %v726, 23
      %v735 = vpop.permute.xlu0 %734
      %vm736 = vcmask 187392
      %v737 = vsel %vm736, %v731, %v733
      %v738 = vsel %vm736, %v733, %v735
      %v741 = vsel %vm229, %v737, 0.0
      %v742 = vsel %vm230, %v738, 0.0
      %v745 = vrot.slane %v741, 4
      %v746 = vrot.slane %v742, 4
      %749 = vst [vmem:[#allocation2 + $0xc0] sm:$0xf0] %v745
      %750 = vst [vmem:[#allocation2 + $0xc8] sm:$0xf0] %v746
      %v751 = vld [vmem:[%s138 + $0x4] sm:$0xff]
      %v752 = vld [vmem:[%s138 + $0xc] sm:$0xf]
      %v755 = vcombine.high %v751, %v751
      %756 = vrot.lane.b32.xlu0 %v751, 16
      %v757 = vpop.permute.xlu0 %756
      %758 = vrot.lane.b32.xlu0 %v755, 16
      %v759 = vpop.permute.xlu0 %758
      %760 = vrot.lane.b32.xlu0 %v752, 16
      %v761 = vpop.permute.xlu0 %760
      %vm762 = vcmask 130048
      %v763 = vsel %vm762, %v757, %v759
      %v764 = vsel %vm762, %v759, %v761
      %767 = vst [vmem:[#allocation2 + $0xd0] sm:$0xf] %v763
      %768 = vst [vmem:[#allocation2 + $0xd8] sm:$0xf] %v764
      %v769 = vld [vmem:[%s138 + $0x4] sm:$0xff]
      %v770 = vld [vmem:[%s138 + $0xc] sm:$0xf]
      %v773 = vcombine.high %v769, %v769
      %774 = vrot.lane.b32.xlu0 %v769, 9
      %v775 = vpop.permute.xlu0 %774
      %776 = vrot.lane.b32.xlu0 %v773, 9
      %v777 = vpop.permute.xlu0 %776
      %778 = vrot.lane.b32.xlu0 %v770, 9
      %v779 = vpop.permute.xlu0 %778
      %vm780 = vcmask 72704
      %v781 = vsel %vm780, %v775, %v777
      %v782 = vsel %vm780, %v777, %v779
      %v785 = vsel %vm241, %v781, 0.0
      %v786 = vsel %vm242, %v782, 0.0
      %v789 = vrot.slane %v785, 4
      %v790 = vrot.slane %v786, 4
      %793 = vst [vmem:[#allocation2 + $0xd0] sm:$0xf0] %v789
      %794 = vst [vmem:[#allocation2 + $0xd8] sm:$0xf0] %v790
      %v795 = vlaneseq
      %v796 = vshrl.u32 %v795, 7
      %v797 = vadd.s32 %v796, 8
      %vm798 = vcmp.eq.s32.totalorder %v796, 0
      %vm799 = vcmp.eq.s32.totalorder %v797, 0
      %v800 = vsel %vm798, 1, 0
      %v801 = vsel %vm799, 1, 0
      %v802 = vcvt.s32.f32 %v800
      %v803 = vcvt.s32.f32 %v801
      %804 = vst [vmem:[#allocation2 + $0xe0] sm:$0xff] %v802
      %805 = vst [vmem:[#allocation2 + $0xe8] sm:$0xff] %v802
      %806 = vst [vmem:[#allocation2 + $0xf0] sm:$0xff] %v803
      %807 = vst [vmem:[#allocation2 + $0xf8] sm:$0xff] %v803
      %v808 = vld [vmem:[%s1] sm:$0xff]
      %v809 = vld [vmem:[#allocation2] sm:$0xff]
      %v810 = vld [vmem:[#allocation2 + $0x8] sm:$0xff]
      %v811 = vld [vmem:[#allocation2 + $0x10] sm:$0xff]
      %v812 = vld [vmem:[#allocation2 + $0x18] sm:$0xff]
      %v813 = vld [vmem:[#allocation2 + $0x20] sm:$0xff]
      %v814 = vld [vmem:[#allocation2 + $0x28] sm:$0xff]
      %v815 = vld [vmem:[#allocation2 + $0x30] sm:$0xff]
      %v816 = vld [vmem:[#allocation2 + $0x38] sm:$0xff]
      %v817 = vld [vmem:[#allocation2 + $0x40] sm:$0xff]
      %v818 = vld [vmem:[#allocation2 + $0x48] sm:$0xff]
      %v819 = vld [vmem:[#allocation2 + $0x50] sm:$0xff]
      %v820 = vld [vmem:[#allocation2 + $0x58] sm:$0xff]
      %v821 = vld [vmem:[#allocation2 + $0x60] sm:$0xff]
      %v822 = vld [vmem:[#allocation2 + $0x68] sm:$0xff]
      %v823 = vld [vmem:[#allocation2 + $0x70] sm:$0xff]
      %v824 = vld [vmem:[#allocation2 + $0x78] sm:$0xff]
      %v825 = vld [vmem:[#allocation2 + $0x80] sm:$0xff]
      %v826 = vld [vmem:[#allocation2 + $0x88] sm:$0xff]
      %v827 = vld [vmem:[#allocation2 + $0x90] sm:$0xff]
      %v828 = vld [vmem:[#allocation2 + $0x98] sm:$0xff]
      %v829 = vld [vmem:[#allocation2 + $0xa0] sm:$0xff]
      %v830 = vld [vmem:[#allocation2 + $0xa8] sm:$0xff]
      %v831 = vld [vmem:[#allocation2 + $0xb0] sm:$0xff]
      %v832 = vld [vmem:[#allocation2 + $0xb8] sm:$0xff]
      %v833 = vld [vmem:[#allocation2 + $0xc0] sm:$0xff]
      %v834 = vld [vmem:[#allocation2 + $0xc8] sm:$0xff]
      %v835 = vld [vmem:[#allocation2 + $0xd0] sm:$0xff]
      %v836 = vld [vmem:[#allocation2 + $0xd8] sm:$0xff]
      %v837 = vld [vmem:[#allocation2 + $0xe0] sm:$0xff]
      %v838 = vld [vmem:[#allocation2 + $0xe8] sm:$0xff]
      %v839 = vld [vmem:[#allocation2 + $0xf0] sm:$0xff]
      %v840 = vld [vmem:[#allocation2 + $0xf8] sm:$0xff]
      %841 = vmatprep.subr.mxu0 %v810
      %842 = vmatpush1.msra.mxu0 %v809
      %843 = vmatprep.subr.mxu0 %v812
      %844 = vmatpush1.msra.mxu0 %v811
      %845 = vmatprep.subr.mxu0 %v814
      %846 = vmatpush1.msra.mxu0 %v813
      %847 = vmatprep.subr.mxu0 %v816
      %848 = vmatpush1.msra.mxu0 %v815
      %849 = vmatprep.subr.mxu0 %v818
      %850 = vmatpush1.msra.mxu0 %v817
      %851 = vmatprep.subr.mxu0 %v820
      %852 = vmatpush1.msra.mxu0 %v819
      %853 = vmatprep.subr.mxu0 %v822
      %854 = vmatpush1.msra.mxu0 %v821
      %855 = vmatprep.subr.mxu0 %v824
      %856 = vmatpush1.msra.mxu0 %v823
      %857 = vmatprep.subr.mxu0 %v826
      %858 = vmatpush1.msra.mxu0 %v825
      %859 = vmatprep.subr.mxu0 %v828
      %860 = vmatpush1.msra.mxu0 %v827
      %861 = vmatprep.subr.mxu0 %v830
      %862 = vmatpush1.msra.mxu0 %v829
      %863 = vmatprep.subr.mxu0 %v832
      %864 = vmatpush1.msra.mxu0 %v831
      %865 = vmatprep.subr.mxu0 %v834
      %866 = vmatpush1.msra.mxu0 %v833
      %867 = vmatprep.subr.mxu0 %v836
      %868 = vmatpush1.msra.mxu0 %v835
      %869 = vmatprep.subr.mxu0 %v838
      %870 = vmatpush1.msra.mxu0 %v837
      %871 = vmatprep.subr.mxu0 %v840
      %872 = vmatpush1.msra.mxu0 %v839
      %873 = vmatprep.subr.mxu0 0.0
      %874 = vmatpush1.msra.mxu0 0.0
      %875 = vmatprep.subr.mxu0 0.0
      %876 = vmatpush1.msra.mxu0 0.0
      %877 = vmatprep.subr.mxu0 0.0
      %878 = vmatpush1.msra.mxu0 0.0
      %879 = vmatprep.subr.mxu0 0.0
      %880 = vmatpush1.msra.mxu0 0.0
      %881 = vmatprep.subr.mxu0 0.0
      %882 = vmatpush1.msra.mxu0 0.0
      %883 = vmatprep.subr.mxu0 0.0
      %884 = vmatpush1.msra.mxu0 0.0
      %885 = vmatprep.subr.mxu0 0.0
      %886 = vmatpush1.msra.mxu0 0.0
      %887 = vmatprep.subr.mxu0 0.0
      %888 = vmatpush1.msra.mxu0 0.0
      %889 = vmatprep.subr.mxu0 0.0
      %890 = vmatpush1.msra.mxu0 0.0
      %891 = vmatprep.subr.mxu0 0.0
      %892 = vmatpush1.msra.mxu0 0.0
      %893 = vmatprep.subr.mxu0 0.0
      %894 = vmatpush1.msra.mxu0 0.0
      %895 = vmatprep.subr.mxu0 0.0
      %896 = vmatpush1.msra.mxu0 0.0
      %897 = vmatprep.subr.mxu0 0.0
      %898 = vmatpush1.msra.mxu0 0.0
      %899 = vmatprep.subr.mxu0 0.0
      %900 = vmatpush1.msra.mxu0 0.0
      %901 = vmatprep.subr.mxu0 0.0
      %902 = vmatpush1.msra.mxu0 0.0
      %903 = vmatprep.subr.mxu0 0.0
      %904 = vmatpush1.msra.mxu0 0.0
      %905 = vmatprep.mubr.f32.mxu0 0.0
      %906 = vmatmul.mubr.f32.gmra.mrb[0].mxu0 %v808
      %v907 = vpop.f32.mrb[0].mxu0
      %v908 = vadd.f32 0.0, %v907
      %v909 = vpop.f32.mrb[0].mxu0
      %v910 = vadd.f32 0.0, %v909
      %911 = vdwg.mxu0
      %912 = vst [vmem:[%s143] sm:$0xff] %v908
      %913 = vst [vmem:[%s143 + $0x8] sm:$0xff] %v910
      %p914 = scmp.lt.s32.totalorder %s13, 1
      %s915 = scalar_select %p914, %s13, 1
      %s916 = smul.addr %s915, 2
      %s917 = smul.addr %s916, 8
      %s918 = scalar_lea.vmem %s2, %s917
      // Predicated region
      $region29: #{cpfe_pallas.1} parent=27 // pred_check
        %p919 = pneg %p78
      $region30: #{cpfe_pallas.1} parent=27 // pred_check_branch
        %921 = sbr.rel (%p919) target = $region32
      $region31: #{cpfe_pallas.1} parent=27 // pred_region
        _
      $region32: #{cpfe_pallas.1} parent=27 // pred_fallthru
        _
    $region28: #{cpfe_pallas.1} parent=5 // pred_fallthru
      _
    %p922 = scmp.le.s32.totalorder 2, %s8
    // Predicated region
    $region33: #{cpfe_pallas.1} parent=5 // pred_check
      %p923 = pneg %p922
    $region34: #{cpfe_pallas.1} parent=5 // pred_check_branch
      %925 = sbr.rel (%p923) target = $region36
    $region35: #{cpfe_pallas.1} parent=5 // pred_region
      %s926 = ssub.s32 %s8, 2
      // Predicated region
      $region37: #{cpfe_pallas.1} parent=35 // pred_check
        %p927 = pneg %p84
      $region38: #{cpfe_pallas.1} parent=35 // pred_check_branch
        %929 = sbr.rel (%p927) target = $region40
      $region39: #{cpfe_pallas.1} parent=35 // pred_region
        %p930 = scmp.lt.s32.totalorder %s14, 1
        %s931 = scalar_select %p930, %s14, 1
        %s932 = smul.addr %s931, 2
        %s933 = smul.addr %s932, 8
        %s934 = scalar_lea.vmem %s2, %s933
      $region40: #{cpfe_pallas.1} parent=35 // pred_fallthru
        _
    $region36: #{cpfe_pallas.1} parent=5 // pred_fallthru
      _
  $region6: #{cpfe_pallas.1} parent=0 // loop_footer
    %s12 = sadd.s32 1, %s8
  $region7: #{cpfe_pallas.1} parent=0 // loop_footer_branch
    %7 = sbr.rel target = $region3
  $region8: #{cpfe_pallas.1} parent=0 // loop_exit
    _

</llo_original>
